<compile_context>
chip_gen: v7x
topology: tpu7x:2x2x1
jax: 0.10.0
libtpu: 0.0.40
codegen_flags: <defaults>
</compile_context>

<pallas_src>
import jax
import jax.numpy as jnp
from jax.experimental import pallas as pl
from jax.experimental.pallas import tpu as pltpu

P_DROP = 0.25      # dropout probability p
SHARED_DIM = 1     # dimension the mask is shared (broadcast) along
LANE = 128


def shared_dropout_kernel(mask_ref, x_ref, o_ref):
    # mask_ref : (1, CD)   shared dropout mask, values in {0, 1/(1-p)}
    # x_ref    : (TR, CD)  one row block of one batch element
    # o_ref    : (TR, CD)
    # Broadcast of the mask across the TR rows (sublane dim) is in-register.
    o_ref[...] = x_ref[...] * mask_ref[...]


def _vmem_capacity_bytes():
    """Physical VMEM of the current chip; conservative fallback if unknown."""
    try:
        cap = getattr(pltpu.get_tpu_info(), "vmem_capacity_bytes", None)
        if cap:
            return int(cap)
    except Exception:
        pass
    return 64 << 20  # v7x per-core size: safe lower bound for all generations


def _sublane_multiple(dtype):
    """Rows per packed vreg sublane tile: 8 (f32), 16 (bf16), 32 (int8/fp8)."""
    return max(8, 32 // jnp.dtype(dtype).itemsize)


def _round_up(x, m):
    return -(-x // m) * m


def _pick_row_tile(R, bytes_per_row, sublane, batch, target_tile_bytes,
                   min_grid_steps=8):
    """Row tile TR (multiple of `sublane`) and padded row count R_pad = k*TR.

    TR is the largest sublane multiple fitting the VMEM target, shrunk if
    needed so the grid has ~min_grid_steps steps for pipelining / dual-core
    sharding.
    """
    # Largest TR fitting the per-buffer VMEM target (round DOWN to sublane).
    tr_cap = max(sublane, (target_tile_bytes // max(1, bytes_per_row))
                 // sublane * sublane)
    # Smallest TR still giving enough total grid steps (round UP to sublane).
    desired_row_blocks = max(1, -(-min_grid_steps // max(1, batch)))
    tr_steps = _round_up(max(1, -(-R // desired_row_blocks)), sublane)
    tr = max(sublane, min(tr_cap, tr_steps))
    r_pad = _round_up(max(R, 1), tr)
    return int(tr), int(r_pad)


def shared_dropout(x, key, p=P_DROP, donate_x=False):
    """Dropout whose mask is shared (broadcast) along SHARED_DIM (= rows).

    Specialized to 4-D [B, R, C, D] activations with shared_dim = 1, matching
    the Evoformer usage of the reference module.
    """
    assert x.ndim == 4 and SHARED_DIM == 1
    B, R, C, D = x.shape
    CD = C * D
    itemsize = jnp.dtype(x.dtype).itemsize

    # --- lane-dense trailing dim: pad C*D to a multiple of 128 -------------
    CD_p = _round_up(CD, LANE)

    # --- shared mask: one decision per (batch, col, channel) ---------------
    scale = jnp.asarray(1.0 / (1.0 - p), dtype=x.dtype)
    keep = jax.random.bernoulli(key, 1.0 - p, (B, 1, CD))
    mask = jnp.where(keep, scale, jnp.zeros((), dtype=x.dtype))
    if CD_p > CD:
        mask = jnp.pad(mask, ((0, 0), (0, 0), (0, CD_p - CD)))

    # --- generation-aware row tiling ---------------------------------------
    vmem_cap = _vmem_capacity_bytes()
    # Pipeline double-buffers input and output => ~4x tile resident in VMEM.
    target_tile_bytes = max(1 << 20, min(8 << 20, vmem_cap // 16))
    sublane = _sublane_multiple(x.dtype)
    TR, R_pad = _pick_row_tile(R, CD_p * itemsize, sublane, B,
                               target_tile_bytes)
    n_row_blocks = R_pad // TR

    # --- pad activation to the tiled shape ---------------------------------
    x3 = x.reshape(B, R, CD)
    if R_pad > R or CD_p > CD:
        x3 = jnp.pad(x3, ((0, 0), (0, R_pad - R), (0, CD_p - CD)))

    # --- scoped VMEM budget (x5e default is only 16 MiB) -------------------
    tile_bytes = TR * CD_p * itemsize
    mask_bytes = CD_p * itemsize
    vmem_needed = 4 * tile_bytes + 2 * mask_bytes + (1 << 20)
    vmem_limit = int(min(vmem_cap, max(vmem_needed, 32 << 20)))

    out3 = pl.pallas_call(
        shared_dropout_kernel,
        out_shape=jax.ShapeDtypeStruct((B, R_pad, CD_p), x.dtype),
        # Row axis innermost: the mask block index changes only B times.
        grid=(B, n_row_blocks),
        in_specs=[
            # mask: tiny (1, CD) block, re-used across all row blocks
            pl.BlockSpec((None, 1, CD_p), lambda b, i: (b, 0, 0)),
            # x: row block i of batch b
            pl.BlockSpec((None, TR, CD_p), lambda b, i: (b, i, 0)),
        ],
        out_specs=pl.BlockSpec((None, TR, CD_p), lambda b, i: (b, i, 0)),
        input_output_aliases=({1: 0} if donate_x else {}),
        compiler_params=pltpu.CompilerParams(
            dimension_semantics=("parallel", "parallel"),
            vmem_limit_bytes=vmem_limit),
    )(mask, x3)

    return out3[:, :R, :CD].reshape(B, R, C, D)


if __name__ == "__main__":
    key = jax.random.PRNGKey(0)
    xkey, mkey = jax.random.split(key)
    # small Evoformer-like pair activation: batch=2, rows=8, cols=16, channels=32
    B, R, C, D = 2, 8, 16, 32
    x = jax.random.normal(xkey, (B, R, C, D), dtype=jnp.float32)

    out = jax.block_until_ready(shared_dropout(x, mkey))

    # Reference: regenerate the identical shared mask and apply in plain JAX.
    scale = 1.0 / (1.0 - P_DROP)
    keep = jax.random.bernoulli(mkey, 1.0 - P_DROP, (B, 1, C * D)).reshape(B, 1, C, D)
    ref = x * jnp.where(keep, jnp.float32(scale), jnp.float32(0.0))

    assert out.shape == x.shape and out.dtype == x.dtype
    assert bool(jnp.allclose(out, ref, atol=1e-6, rtol=1e-6))
    # shared-mask property: dropped (batch, col, channel) positions are zero
    # across ALL rows (mask broadcast along dim 1)
    dropped = jnp.broadcast_to(~keep, out.shape)
    assert bool(jnp.all(jnp.where(dropped, out == 0.0, True)))

    print("KERNEL_OK")
</pallas_src>

<mosaic_0001>
module attributes {stable_mosaic.version = 11 : i64} {
  func.func @shared_dropout_kernel(%arg0: i32, %arg1: i32, %arg2: memref<1x1x512xf32, #tpu.memory_space<vmem>>, %arg3: memref<1x8x512xf32, #tpu.memory_space<vmem>>, %arg4: memref<1x8x512xf32, #tpu.memory_space<vmem>>) attributes {dimension_semantics = [#tpu.dimension_semantics<parallel>, #tpu.dimension_semantics<parallel>], iteration_bounds = array<i64: 2, 1>, scalar_prefetch = 0 : i64, scratch_operands = 0 : i64, tpu.core_type = #tpu.core_type<tc>, window_params = [{transform_indices = @transform_0, window_bounds = array<i64: 1, 1, 512>}, {transform_indices = @transform_1, window_bounds = array<i64: 1, 8, 512>}, {transform_indices = @transform_2, window_bounds = array<i64: 1, 8, 512>}]} {
    %c0 = arith.constant 0 : index
    %c0_0 = arith.constant 0 : index
    %c0_1 = arith.constant 0 : index
    %0 = vector.load %arg3[%c0, %c0_0, %c0_1] : memref<1x8x512xf32, #tpu.memory_space<vmem>>, vector<1x8x512xf32>
    %1 = vector.shape_cast %0 : vector<1x8x512xf32> to vector<8x512xf32>
    %c0_2 = arith.constant 0 : index
    %c0_3 = arith.constant 0 : index
    %c0_4 = arith.constant 0 : index
    %2 = vector.load %arg2[%c0_2, %c0_3, %c0_4] : memref<1x1x512xf32, #tpu.memory_space<vmem>>, vector<1x1x512xf32>
    %3 = vector.shape_cast %2 : vector<1x1x512xf32> to vector<1x512xf32>
    %4 = vector.broadcast %3 : vector<1x512xf32> to vector<8x512xf32>
    %5 = arith.mulf %1, %4 : vector<8x512xf32>
    %c0_5 = arith.constant 0 : index
    %c0_6 = arith.constant 0 : index
    %c0_7 = arith.constant 0 : index
    %6 = vector.load %arg4[%c0_5, %c0_6, %c0_7] : memref<1x8x512xf32, #tpu.memory_space<vmem>>, vector<1x8x512xf32>
    %7 = vector.shape_cast %6 : vector<1x8x512xf32> to vector<8x512xf32>
    %8 = vector.shape_cast %5 : vector<8x512xf32> to vector<1x8x512xf32>
    tpu.vector_store %arg4[%c0_5, %c0_6, %c0_7], %8 {strides = array<i32>} : memref<1x8x512xf32, #tpu.memory_space<vmem>>, vector<1x8x512xf32>,
    return
  }
  func.func @transform_0(%arg0: i32, %arg1: i32) -> (i32, i32, i32) {
    %c0_i32 = arith.constant 0 : i32
    %c0_i32_0 = arith.constant 0 : i32
    %c0_i32_1 = arith.constant 0 : i32
    return %arg0, %c0_i32, %c0_i32_0 : i32, i32, i32
  }
  func.func @transform_1(%arg0: i32, %arg1: i32) -> (i32, i32, i32) {
    %c0_i32 = arith.constant 0 : i32
    %c0_i32_0 = arith.constant 0 : i32
    return %arg0, %arg1, %c0_i32 : i32, i32, i32
  }
  func.func @transform_2(%arg0: i32, %arg1: i32) -> (i32, i32, i32) {
    %c0_i32 = arith.constant 0 : i32
    %c0_i32_0 = arith.constant 0 : i32
    return %arg0, %arg1, %c0_i32 : i32, i32, i32
  }
}

</mosaic_0001>

<llo_original>
// kernel: tpu_custom_call.1
$region0: #{tpu_custom_call.1}
  #allocation0 [shape = 'u32[]', space=smem, size = 0x4, offset = 0x4, fixed_abs, tag = 'smem constant byte address 0x4 - core index']
  #allocation1 [shape = 'u32[144,128]{1,0:T(1,128)}', space=vmem, size = 0x12000, scoped, tag = 'internal scratch']
  %s0 = inlined_call_operand.hbm [shape: f32[2,1,512], index: 0, kind: input, shape index: {}]
  %s1 = inlined_call_operand.hbm [shape: f32[2,8,512], index: 1, kind: input, shape index: {}]
  %s2 = inlined_call_operand.hbm [shape: f32[2,8,512], index: 2, kind: output, shape index: {}]
  %s3 = sld [smem:[#allocation0]]
  $region49: #{tpu_custom_call.1} parent=0
    _
  %s5 = ssub.s32 1, %s3
  %s6 = scalar_select 0, %s5, %s3
  $region1: #{tpu_custom_call.1} parent=0
    #allocation2 [shape = 'u8[4096]{0}', space=vmem, size = 0x1000, scoped, tag = 'input window, operand 0']
    #allocation3 [shape = 's32[2]{0}', space=sflag, size = 0x8, scoped, tag = 'scoped memory for tpu_custom_call.1']
    #allocation4 [shape = 's32[2]{0}', space=sflag, size = 0x8, scoped, tag = 'scoped memory for tpu_custom_call.1']
    #allocation5 [shape = 'u8[32768]{0}', space=vmem, size = 0x8000, scoped, tag = 'input window, operand 1']
    #allocation6 [shape = 's32[2]{0}', space=sflag, size = 0x8, scoped, tag = 'scoped memory for tpu_custom_call.1']
    #allocation7 [shape = 'u8[32768]{0}', space=vmem, size = 0x8000, scoped, tag = 'output window, operand 0']
    %7 = vsyncpa [#allocation3], 0
    %s8 = scalar_lea.sflag [#allocation3], 1
    %9 = vsyncpa %s8, 0
    %10 = vsyncpa [#allocation6], 0
    %s11 = scalar_lea.sflag [#allocation6], 1
    %12 = vsyncpa %s11, 0
    %13 = vsyncpa [#allocation4], 0
    %s14 = scalar_lea.sflag [#allocation4], 1
    %15 = vsyncpa %s14, 0
    loop: start=0, step=1, limit=4
    $region2: #{tpu_custom_call.1} parent=1 // loop_pre_header
      _
    $region3: #{tpu_custom_call.1} parent=1 // loop_header
      %s17 = sphi 0, %s21
      %p18 = scmp.ge.s32.totalorder %s17, 4
      %s24 = sphi 0, %s36
      %s25 = sphi 0, %s32
      %s26 = sphi 0, %s24
      %s27 = sphi 0, %s25
      %s28 = sphi 0, %s26
      %s29 = sphi 0, %s27
      %s39 = sphi 0, %s41
      %s42 = sphi 0, %s39
      %s43 = sphi 0, %s42
      %s59 = sphi 0, %s43
      %s67 = sphi 0, %s69
      %s70 = sphi 0, %s67
      %s71 = sphi 0, %s70
      %s87 = sphi 0, %s71
      %s95 = sphi 0, %s97
      %s98 = sphi 0, %s95
      %s99 = sphi 0, %s98
      %s115 = sphi 0, %s99
    $region4: #{tpu_custom_call.1} parent=1 // loop_header_branch
      %20 = sbr.rel (%p18) target = $region8
    $region5: #{tpu_custom_call.1} parent=1 // loop_body
      %s22 = ssub.s32 %s17, 1
      %s23 = ssub.s32 %s17, 2
      %s30 = sadd.s32 1, %s25
      %p31 = scmp.ge.s32.totalorder %s30, 1
      %s32 = scalar_select %p31, 0, %s30
      %s33 = sadd.s32 1, %s24
      %s34 = scalar_select %p31, %s33, %s24
      %p35 = scmp.ge.s32.totalorder %s34, 2
      %s36 = scalar_select %p35, 0, %s34
      %s37 = ssub.s32 %s24, %s36
      %p38 = scmp.eq.s32.totalorder %s37, 0
      %s40 = sadd.s32 %s39, 1
      %s41 = scalar_select %p38, %s39, %s40
      %p44 = pneg %p38
      %p45 = scmp.eq.s32.totalorder %s17, 1
      %p46 = por %p44, %p45
      %p47 = scmp.ne.s32.totalorder %s39, %s42
      %p48 = scmp.eq.s32.totalorder %s17, 0
      %p49 = por %p47, %p48
      %p50 = scmp.ne.s32.totalorder %s39, %s42
      %p51 = scmp.eq.s32.totalorder %s22, 1
      %p52 = por %p50, %p51
      %p53 = scmp.ne.s32.totalorder %s42, %s43
      %p54 = scmp.eq.s32.totalorder %s22, 0
      %p55 = por %p53, %p54
      %p56 = scmp.ne.s32.totalorder %s42, %s43
      %p57 = scmp.eq.s32.totalorder %s23, 1
      %p58 = por %p56, %p57
      %p60 = scmp.ne.s32.totalorder %s43, %s59
      %p61 = scmp.eq.s32.totalorder %s23, 0
      %p62 = por %p60, %p61
      %s63 = ssub.s32 %s24, %s36
      %s64 = ssub.s32 %s25, %s32
      %s65 = sor.u32 %s63, %s64
      %p66 = scmp.eq.s32.totalorder %s65, 0
      %s68 = sadd.s32 %s67, 1
      %s69 = scalar_select %p66, %s67, %s68
      %p72 = pneg %p66
      %p73 = scmp.eq.s32.totalorder %s17, 1
      %p74 = por %p72, %p73
      %p75 = scmp.ne.s32.totalorder %s67, %s70
      %p76 = scmp.eq.s32.totalorder %s17, 0
      %p77 = por %p75, %p76
      %p78 = scmp.ne.s32.totalorder %s67, %s70
      %p79 = scmp.eq.s32.totalorder %s22, 1
      %p80 = por %p78, %p79
      %p81 = scmp.ne.s32.totalorder %s70, %s71
      %p82 = scmp.eq.s32.totalorder %s22, 0
      %p83 = por %p81, %p82
      %p84 = scmp.ne.s32.totalorder %s70, %s71
      %p85 = scmp.eq.s32.totalorder %s23, 1
      %p86 = por %p84, %p85
      %p88 = scmp.ne.s32.totalorder %s71, %s87
      %p89 = scmp.eq.s32.totalorder %s23, 0
      %p90 = por %p88, %p89
      %s91 = ssub.s32 %s24, %s36
      %s92 = ssub.s32 %s25, %s32
      %s93 = sor.u32 %s91, %s92
      %p94 = scmp.eq.s32.totalorder %s93, 0
      %s96 = sadd.s32 %s95, 1
      %s97 = scalar_select %p94, %s95, %s96
      %p100 = pneg %p94
      %p101 = scmp.eq.s32.totalorder %s17, 1
      %p102 = por %p100, %p101
      %p103 = scmp.ne.s32.totalorder %s95, %s98
      %p104 = scmp.eq.s32.totalorder %s17, 0
      %p105 = por %p103, %p104
      %p106 = scmp.ne.s32.totalorder %s95, %s98
      %p107 = scmp.eq.s32.totalorder %s22, 1
      %p108 = por %p106, %p107
      %p109 = scmp.ne.s32.totalorder %s98, %s99
      %p110 = scmp.eq.s32.totalorder %s22, 0
      %p111 = por %p109, %p110
      %p112 = scmp.ne.s32.totalorder %s98, %s99
      %p113 = scmp.eq.s32.totalorder %s23, 1
      %p114 = por %p112, %p113
      %p116 = scmp.ne.s32.totalorder %s99, %s115
      %p117 = scmp.eq.s32.totalorder %s23, 0
      %p118 = por %p116, %p117
      %p119 = scmp.le.s32.totalorder 1, %s17
      %p120 = scmp.lt.s32.totalorder %s17, 3
      %p121 = pnand %p119, %p120
      %p122 = pneg %p121
      // Predicated region
      $region9: #{tpu_custom_call.1} parent=5 // pred_check
        _
      $region10: #{tpu_custom_call.1} parent=5 // pred_check_branch
        %124 = sbr.rel (%p121) target = $region12
      $region11: #{tpu_custom_call.1} parent=5 // pred_region
        %s125 = ssub.s32 %s17, 1
      $region12: #{tpu_custom_call.1} parent=5 // pred_fallthru
        _
      %p126 = scmp.lt.s32.totalorder %s17, 2
      // Predicated region
      $region13: #{tpu_custom_call.1} parent=5 // pred_check
        %p127 = pneg %p126
      $region14: #{tpu_custom_call.1} parent=5 // pred_check_branch
        %129 = sbr.rel (%p127) target = $region16
      $region15: #{tpu_custom_call.1} parent=5 // pred_region
        // Predicated region
        $region17: #{tpu_custom_call.1} parent=15 // pred_check
          %p130 = pneg %p49
        $region18: #{tpu_custom_call.1} parent=15 // pred_check_branch
          %132 = sbr.rel (%p130) target = $region20
        $region19: #{tpu_custom_call.1} parent=15 // pred_region
          %s133 = sand.u32 %s39, 1
          %s134 = scalar_lea.sflag [#allocation3], %s133
          %s135 = sand.u32 %s39, 1
          %s136 = smul.addr %s135, 4
          %s137 = scalar_lea.vmem [#allocation2], %s136
          %s139 = ssub.s32 64, 64
          %140 = vsyncadd %s134, %s139
          %s141 = smul.addr %s24, 4
          %s142 = smul.addr %s141, 16
          %s143 = scalar_lea.hbm %s0, %s142
          %s145 = sshll.u32 %s137, 4
          %s146 = int_to_ptr.vmem [resolvable:$true] %s145
          %148 = dma.hbm_to_vmem [thread:$0]  %s143, 64, %s146, %s134
        $region20: #{tpu_custom_call.1} parent=15 // pred_fallthru
          _
        // Predicated region
        $region21: #{tpu_custom_call.1} parent=15 // pred_check
          %p149 = pneg %p77
        $region22: #{tpu_custom_call.1} parent=15 // pred_check_branch
          %151 = sbr.rel (%p149) target = $region24
        $region23: #{tpu_custom_call.1} parent=15 // pred_region
          %s152 = sand.u32 %s67, 1
          %s153 = scalar_lea.sflag [#allocation6], %s152
          %s154 = sand.u32 %s67, 1
          %s155 = smul.addr %s154, 32
          %s156 = scalar_lea.vmem [#allocation5], %s155
          %s158 = ssub.s32 512, 512
          %159 = vsyncadd %s153, %s158
          %s160 = smul.addr %s25, 4
          %s161 = smul.addr %s24, 4
          %s162 = sadd.s32 %s160, %s161
          %s163 = smul.addr %s162, 128
          %s164 = scalar_lea.hbm %s1, %s163
          %s166 = sshll.u32 %s156, 4
          %s167 = int_to_ptr.vmem [resolvable:$true] %s166
          %169 = dma.hbm_to_vmem [thread:$0]  %s164, 512, %s167, %s153
        $region24: #{tpu_custom_call.1} parent=15 // pred_fallthru
          _
      $region16: #{tpu_custom_call.1} parent=5 // pred_fallthru
        _
      %p170 = scmp.le.s32.totalorder 1, %s17
      %p171 = scmp.lt.s32.totalorder %s17, 3
      %p172 = pnand %p170, %p171
      %p173 = pneg %p172
      // Predicated region
      $region25: #{tpu_custom_call.1} parent=5 // pred_check
        _
      $region26: #{tpu_custom_call.1} parent=5 // pred_check_branch
        %175 = sbr.rel (%p172) target = $region28
      $region27: #{tpu_custom_call.1} parent=5 // pred_region
        %s176 = ssub.s32 %s17, 1
        %s177 = sand.u32 %s42, 1
        %s178 = scalar_lea.sflag [#allocation3], %s177
        %s179 = sand.u32 %s42, 1
        %s180 = smul.addr %s179, 4
        %s181 = scalar_lea.vmem [#allocation2], %s180
        // Predicated region
        $region29: #{tpu_custom_call.1} parent=27 // pred_check
          %p182 = pneg %p55
        $region30: #{tpu_custom_call.1} parent=27 // pred_check_branch
          %184 = sbr.rel (%p182) target = $region32
        $region31: #{tpu_custom_call.1} parent=27 // pred_region
          %185 = dma.done %s178, 64
        $region32: #{tpu_custom_call.1} parent=27 // pred_fallthru
          _
        %s186 = sand.u32 %s70, 1
        %s187 = scalar_lea.sflag [#allocation6], %s186
        %s188 = sand.u32 %s70, 1
        %s189 = smul.addr %s188, 32
        %s190 = scalar_lea.vmem [#allocation5], %s189
        // Predicated region
        $region33: #{tpu_custom_call.1} parent=27 // pred_check
          %p191 = pneg %p83
        $region34: #{tpu_custom_call.1} parent=27 // pred_check_branch
          %193 = sbr.rel (%p191) target = $region36
        $region35: #{tpu_custom_call.1} parent=27 // pred_region
          %194 = dma.done %s187, 512
        $region36: #{tpu_custom_call.1} parent=27 // pred_fallthru
          _
        %s195 = sand.u32 %s42, 1
        %s196 = scalar_lea.sflag [#allocation3], %s195
        %s197 = sand.u32 %s42, 1
        %s198 = smul.addr %s197, 4
        %s199 = scalar_lea.vmem [#allocation2], %s198
        %p200 = pneg %p55
        %p201 = pneg %p52
        %s202 = sand.u32 %s70, 1
        %s203 = scalar_lea.sflag [#allocation6], %s202
        %s204 = sand.u32 %s70, 1
        %s205 = smul.addr %s204, 32
        %s206 = scalar_lea.vmem [#allocation5], %s205
        %p207 = pneg %p83
        %p208 = pneg %p80
        %p209 = pneg %p111
        %p210 = pneg %p108
        %s211 = sand.u32 %s98, 1
        %s212 = scalar_lea.sflag [#allocation4], %s211
        %s213 = sand.u32 %s98, 1
        %s214 = smul.addr %s213, 32
        %s215 = scalar_lea.vmem [#allocation7], %s214
        %v216 = vld [vmem:[%s190] sm:$0xff]
        %v217 = vld [vmem:[%s190 + $0x8] sm:$0xff]
        %v218 = vld [vmem:[%s190 + $0x10] sm:$0xff]
        %v219 = vld [vmem:[%s190 + $0x18] sm:$0xff]
        %v220 = vld [vmem:[%s181] sm:$0xf]
        %v222 = vlaneseq
        %v223 = vshrl.u32 %v222, 7
        %v224 = vsub.s32 0, %v223
        %v225 = vrot.slane %v220, %v224
        %v226 = vlaneseq
        %v227 = vshrl.u32 %v226, 7
        %v228 = vsub.s32 1, %v227
        %v229 = vrot.slane %v220, %v228
        %v230 = vlaneseq
        %v231 = vshrl.u32 %v230, 7
        %v232 = vsub.s32 2, %v231
        %v233 = vrot.slane %v220, %v232
        %v234 = vlaneseq
        %v235 = vshrl.u32 %v234, 7
        %v236 = vsub.s32 3, %v235
        %v237 = vrot.slane %v220, %v236
        %v242 = vmul.f32 %v216, %v225
        %v243 = vmul.f32 %v217, %v229
        %v244 = vmul.f32 %v218, %v233
        %v245 = vmul.f32 %v219, %v237
        %246 = vst [vmem:[%s215] sm:$0xff] %v242
        %247 = vst [vmem:[%s215 + $0x8] sm:$0xff] %v243
        %248 = vst [vmem:[%s215 + $0x10] sm:$0xff] %v244
        %249 = vst [vmem:[%s215 + $0x18] sm:$0xff] %v245
        %s250 = sand.u32 %s98, 1
        %s251 = scalar_lea.sflag [#allocation4], %s250
        %s252 = sand.u32 %s98, 1
        %s253 = smul.addr %s252, 32
        %s254 = scalar_lea.vmem [#allocation7], %s253
        // Predicated region
        $region37: #{tpu_custom_call.1} parent=27 // pred_check
          %p255 = pneg %p108
        $region38: #{tpu_custom_call.1} parent=27 // pred_check_branch
          %257 = sbr.rel (%p255) target = $region40
        $region39: #{tpu_custom_call.1} parent=27 // pred_region
          %s259 = ssub.s32 512, 512
          %260 = vsyncadd %s251, %s259
          %s261 = smul.addr %s27, 4
          %s262 = smul.addr %s26, 4
          %s263 = sadd.s32 %s261, %s262
          %s264 = smul.addr %s263, 128
          %s265 = scalar_lea.hbm %s2, %s264
          %s267 = sshll.u32 %s254, 4
          %s268 = int_to_ptr.vmem [resolvable:$true] %s267
          %270 = dma.vmem_to_hbm [thread:$0]  %s268, 512, %s265, %s251
        $region40: #{tpu_custom_call.1} parent=27 // pred_fallthru
          _
      $region28: #{tpu_custom_call.1} parent=5 // pred_fallthru
        _
      %p271 = scmp.le.s32.totalorder 2, %s17
      // Predicated region
      $region41: #{tpu_custom_call.1} parent=5 // pred_check
        %p272 = pneg %p271
      $region42: #{tpu_custom_call.1} parent=5 // pred_check_branch
        %274 = sbr.rel (%p272) target = $region44
      $region43: #{tpu_custom_call.1} parent=5 // pred_region
        %s275 = ssub.s32 %s17, 2
        // Predicated region
        $region45: #{tpu_custom_call.1} parent=43 // pred_check
          %p276 = pneg %p114
        $region46: #{tpu_custom_call.1} parent=43 // pred_check_branch
          %278 = sbr.rel (%p276) target = $region48
        $region47: #{tpu_custom_call.1} parent=43 // pred_region
          %s279 = sand.u32 %s99, 1
          %s280 = scalar_lea.sflag [#allocation4], %s279
          %s281 = sand.u32 %s99, 1
          %s282 = smul.addr %s281, 32
          %s283 = scalar_lea.vmem [#allocation7], %s282
          %284 = dma.done %s280, 512
        $region48: #{tpu_custom_call.1} parent=43 // pred_fallthru
          _
      $region44: #{tpu_custom_call.1} parent=5 // pred_fallthru
        _
    $region6: #{tpu_custom_call.1} parent=1 // loop_footer
      %s21 = sadd.s32 1, %s17
    $region7: #{tpu_custom_call.1} parent=1 // loop_footer_branch
      %16 = sbr.rel target = $region3
    $region8: #{tpu_custom_call.1} parent=1 // loop_exit
      _
    %285 = vsyncpa [#allocation3], 1
    %s286 = scalar_lea.sflag [#allocation3], 1
    %287 = vsyncpa %s286, 1
    %288 = vsyncpa [#allocation6], 1
    %s289 = scalar_lea.sflag [#allocation6], 1
    %290 = vsyncpa %s289, 1
    %291 = vsyncpa [#allocation4], 1
    %s292 = scalar_lea.sflag [#allocation4], 1
    %293 = vsyncpa %s292, 1

</llo_original>
